<compile_context>
chip_gen: v6e
topology: v6e:2x2x1
jax: 0.10.0
libtpu: 0.0.40
codegen_flags: <defaults>
</compile_context>

<pallas_src>
import numpy as np
import jax
import jax.numpy as jnp
from jax.experimental import pallas as pl
from jax.experimental.pallas import tpu as pltpu

N_QUBITS = 4
N_STATES = 2 ** N_QUBITS      # 16
N_POW = N_QUBITS + 1          # polynomial degree 4 -> 5 coefficients
K_PAD = 8                     # padded contraction dim for the fused 1st layer
HIDDEN = 32


def _cx_chain_bit_table():
    """Host-side reference table (used only by the numpy reference check).

    Row i, column j = bit i of the pre-CX product-state index whose
    probability lands on measured outcome j (qiskit bit ordering).
    """
    table = np.zeros((N_QUBITS, N_STATES), dtype=np.float32)
    for old in range(N_STATES):
        q = [(old >> i) & 1 for i in range(N_QUBITS)]
        q1 = q[1] ^ q[0]
        q2 = q[2] ^ q1
        q3 = q[3] ^ q2
        new = q[0] + 2 * q1 + 4 * q2 + 8 * q3
        for i in range(N_QUBITS):
            table[i, new] = q[i]
    return table


def _poly_coeff_table():
    """(16, 5) constant C:  prob(outcome n) = sum_m C[n, m] * sin(2*pi*x)^m.

    Built from p1 = (1+s)/2, p0 = (1-s)/2 and the inverse of the
    CX(0,1),CX(1,2),CX(2,3) chain (q0=n0, q1=n0^n1, q2=n1^n2, q3=n2^n3).
    """
    coeffs = np.zeros((N_STATES, N_POW), dtype=np.float64)
    for n in range(N_STATES):
        bits = [(n >> i) & 1 for i in range(N_QUBITS)]
        q = (bits[0], bits[0] ^ bits[1], bits[1] ^ bits[2], bits[2] ^ bits[3])
        poly = np.array([1.0])
        for qi in q:
            factor = [0.5, 0.5] if qi else [0.5, -0.5]   # increasing powers
            poly = np.convolve(poly, factor)
        coeffs[n, :] = poly
    return coeffs


_POLY_C = _poly_coeff_table()


def _round_up(n, m):
    return ((n + m - 1) // m) * m


def _auto_tile(batch, max_tile=4096):
    """Pick a lane-dense batch tile: big enough to amortise the per-grid-step
    overhead, capped at max_tile, and >= 2 grid steps when the batch allows it
    so the 'parallel' axis can shard across both TensorCores on v7x."""
    b128 = _round_up(max(batch, 1), 128)
    if b128 <= 128:
        return 128
    return min(max_tile, _round_up((b128 + 1) // 2, 128))


def hybrid_kernel(x_ref, w1e_ref, b1_ref, w2c_ref, b2_ref, o_ref, v_ref):
    tb = x_ref.shape[1]

    # --- quantum feature prologue: powers of s = sin(2*pi*x) ---------------
    # The 16 exact outcome probabilities are degree-4 polynomials in s whose
    # coefficients were folded into W1 on the host, so the only per-element
    # transcendental is one sin() and the only per-element VALU work here is
    # three multiplies on (1, TB) lane-dense rows.
    s = jnp.sin(2.0 * jnp.pi * x_ref[...])        # (1, TB), single EUP push
    s2 = s * s
    v_ref[0:1, :] = s
    v_ref[1:2, :] = s2
    v_ref[2:3, :] = s2 * s
    v_ref[3:4, :] = s2 * s2
    # Pad rows must be zero every iteration (scratch is uninitialised and,
    # under "parallel" semantics, program_id==0 may never run on core 1).
    v_ref[4:K_PAD, :] = jnp.zeros((K_PAD - 4, tb), jnp.float32)

    # --- fused quantum-features + Linear(16, H): one tiny MXU matmul --------
    # h^T[r, b] = sum_m W1_eff[r, m] * s(b)^(m+1)   (constant term is in b1)
    h = jnp.dot(w1e_ref[...], v_ref[...], preferred_element_type=jnp.float32)
    h = jnp.maximum(h + b1_ref[...], 0.0)          # (H_pad, TB), ReLU

    # --- Linear(H, 1) as VPU multiply + XLU sublane reduce (no M=1 matmul) --
    logits = jnp.sum(h * w2c_ref[...], axis=0, keepdims=True)   # (1, TB)
    logits = logits + b2_ref[0, 0]                 # scalar bias from SMEM
    o_ref[...] = jax.nn.sigmoid(logits)            # (1, TB) lane-dense store


def hybrid_forward(x, w1, b1, w2, b2, *, tile_b=None, max_tile=4096):
    """x: (B,) or (B,1) scalar circuit parameters.  Returns (B, 1) float32."""
    x = jnp.asarray(x, jnp.float32).reshape(-1)
    B = x.shape[0]
    if tile_b is None:
        tile_b = _auto_tile(B, max_tile)
    assert tile_b % 128 == 0, "batch tile must be lane-dense (multiple of 128)"
    B_pad = _round_up(B, tile_b)
    grid_b = B_pad // tile_b

    # Batch as a single lane-dense row; zero padding is benign and sliced off.
    x_row = jnp.pad(x, (0, B_pad - B)).reshape(1, B_pad)

    # Fold the 16x5 outcome-probability polynomial coefficients through the
    # first Linear layer (hidden axis on sublanes, padded to a multiple of 8;
    # padded rows/cols stay exactly zero through ReLU and the w2 dot).
    H = w1.shape[1]
    H_pad = max(8, _round_up(H, 8))
    coeff = jnp.asarray(_POLY_C, jnp.float32)                 # (16, 5)
    w1tc = jnp.asarray(w1, jnp.float32).T @ coeff             # (H, 5)
    b1_eff = jnp.asarray(b1, jnp.float32).reshape(-1) + w1tc[:, 0]
    w1e = jnp.zeros((H_pad, K_PAD), jnp.float32).at[:H, :N_POW - 1].set(
        w1tc[:, 1:N_POW])
    b1c = jnp.zeros((H_pad, 1), jnp.float32).at[:H, 0].set(b1_eff)
    w2c = jnp.zeros((H_pad, 1), jnp.float32).at[:H, 0].set(
        jnp.asarray(w2, jnp.float32).reshape(-1))
    b2s = jnp.asarray(b2, jnp.float32).reshape(1, 1)

    out_row = pl.pallas_call(
        hybrid_kernel,
        out_shape=jax.ShapeDtypeStruct((1, B_pad), jnp.float32),
        grid=(grid_b,),
        in_specs=[
            pl.BlockSpec((1, tile_b), lambda i: (0, i)),           # x tile
            pl.BlockSpec((H_pad, K_PAD), lambda i: (0, 0)),        # W1_eff
            pl.BlockSpec((H_pad, 1), lambda i: (0, 0)),            # b1 column
            pl.BlockSpec((H_pad, 1), lambda i: (0, 0)),            # w2 column
            pl.BlockSpec(memory_space=pltpu.MemorySpace.SMEM),     # b2 scalar
        ],
        out_specs=pl.BlockSpec((1, tile_b), lambda i: (0, i)),
        scratch_shapes=[pltpu.VMEM((K_PAD, tile_b), jnp.float32)],  # V = powers
        compiler_params=pltpu.CompilerParams(
            dimension_semantics=("parallel",)),
    )(x_row, w1e, b1c, w2c, b2s)

    return out_row[0, :B].reshape(B, 1)


def _reference(x_np, w1, b1, w2, b2):
    """Independent float64 reference using the product (select) formulation."""
    bits = _cx_chain_bit_table().astype(np.float64)
    theta = 2.0 * np.pi * x_np.reshape(-1, 1)
    c = np.cos(0.5 * theta)
    s = np.sin(0.5 * theta)
    p0 = 0.5 * (c - s) ** 2
    p1 = 0.5 * (c + s) ** 2
    feat = np.ones((x_np.shape[0], N_STATES), dtype=np.float64)
    for i in range(N_QUBITS):
        row = bits[i][None, :]
        feat = feat * (row * p1 + (1.0 - row) * p0)
    h = np.maximum(feat @ w1 + b1[None, :], 0.0)
    z = h @ w2 + b2[None, :]
    return 1.0 / (1.0 + np.exp(-z))


if __name__ == "__main__":
    key = jax.random.PRNGKey(0)
    kx, k1, k2, k3, k4 = jax.random.split(key, 5)

    # Modest batch of scalar circuit parameters; auto-tiling picks tile_b=256
    # here -> a 2-step grid, exercising both the padding path (B=300 -> 512)
    # and the multi-step (megacore-shardable) grid.
    B = 300
    x = jax.random.uniform(kx, (B,), dtype=jnp.float32)

    # Deterministic parameter init mimicking nn.Linear defaults.
    bound1 = 1.0 / np.sqrt(N_STATES)
    bound2 = 1.0 / np.sqrt(HIDDEN)
    w1 = jax.random.uniform(k1, (N_STATES, HIDDEN), jnp.float32, -bound1, bound1)
    b1 = jax.random.uniform(k2, (HIDDEN,), jnp.float32, -bound1, bound1)
    w2 = jax.random.uniform(k3, (HIDDEN, 1), jnp.float32, -bound2, bound2)
    b2 = jax.random.uniform(k4, (1,), jnp.float32, -bound2, bound2)

    out = hybrid_forward(x, w1, b1, w2, b2)
    out = jax.block_until_ready(out)

    ref = _reference(
        np.asarray(x, np.float64),
        np.asarray(w1, np.float64),
        np.asarray(b1, np.float64),
        np.asarray(w2, np.float64),
        np.asarray(b2, np.float64),
    )
    np.testing.assert_allclose(np.asarray(out), ref, rtol=5e-4, atol=5e-5)

    # TODO(synk): the qiskit qasm simulator adds 1024-shot sampling noise; the
    # kernel returns the exact probabilities (the noiseless expectation).
    print("KERNEL_OK")
</pallas_src>

<mosaic_0001>
module attributes {stable_mosaic.version = 11 : i64} {
  func.func @hybrid_kernel(%arg0: i32, %arg1: memref<1x256xf32, #tpu.memory_space<vmem>>, %arg2: memref<32x8xf32, #tpu.memory_space<vmem>>, %arg3: memref<32x1xf32, #tpu.memory_space<vmem>>, %arg4: memref<32x1xf32, #tpu.memory_space<vmem>>, %arg5: memref<1x1xf32, #tpu.memory_space<smem>>, %arg6: memref<1x256xf32, #tpu.memory_space<vmem>>, %arg7: memref<8x256xf32, #tpu.memory_space<vmem>>) attributes {dimension_semantics = [#tpu.dimension_semantics<parallel>], iteration_bounds = array<i64: 2>, scalar_prefetch = 0 : i64, scratch_operands = 1 : i64, tpu.core_type = #tpu.core_type<tc>, window_params = [{transform_indices = @transform_0, window_bounds = array<i64: 1, 256>}, {pipeline_mode = #tpu.pipeline_mode<synchronous>, transform_indices = @transform_1, window_bounds = array<i64: 32, 8>}, {pipeline_mode = #tpu.pipeline_mode<synchronous>, transform_indices = @transform_2, window_bounds = array<i64: 32, 1>}, {pipeline_mode = #tpu.pipeline_mode<synchronous>, transform_indices = @transform_3, window_bounds = array<i64: 32, 1>}, {transform_indices = @transform_4, window_bounds = array<i64: 1, 1>}, {transform_indices = @transform_5, window_bounds = array<i64: 1, 256>}]} {
    %c0 = arith.constant 0 : index
    %c0_0 = arith.constant 0 : index
    %0 = vector.load %arg1[%c0, %c0_0] : memref<1x256xf32, #tpu.memory_space<vmem>>, vector<1x256xf32>
    %cst = arith.constant 6.28318548 : f32
    %1 = vector.broadcast %cst : f32 to vector<1x256xf32>
    %2 = arith.mulf %1, %0 : vector<1x256xf32>
    %3 = math.sin %2 : vector<1x256xf32>
    %4 = arith.mulf %3, %3 : vector<1x256xf32>
    %c0_1 = arith.constant 0 : index
    %c0_2 = arith.constant 0 : index
    %5 = vector.load %arg7[%c0_1, %c0_2] : memref<8x256xf32, #tpu.memory_space<vmem>>, vector<1x256xf32>
    tpu.vector_store %arg7[%c0_1, %c0_2], %3 {strides = array<i32>} : memref<8x256xf32, #tpu.memory_space<vmem>>, vector<1x256xf32>,
    %c1 = arith.constant 1 : index
    %c0_3 = arith.constant 0 : index
    %6 = vector.load %arg7[%c1, %c0_3] : memref<8x256xf32, #tpu.memory_space<vmem>>, vector<1x256xf32>
    tpu.vector_store %arg7[%c1, %c0_3], %4 {strides = array<i32>} : memref<8x256xf32, #tpu.memory_space<vmem>>, vector<1x256xf32>,
    %7 = arith.mulf %4, %3 : vector<1x256xf32>
    %c2 = arith.constant 2 : index
    %c0_4 = arith.constant 0 : index
    %8 = vector.load %arg7[%c2, %c0_4] : memref<8x256xf32, #tpu.memory_space<vmem>>, vector<1x256xf32>
    tpu.vector_store %arg7[%c2, %c0_4], %7 {strides = array<i32>} : memref<8x256xf32, #tpu.memory_space<vmem>>, vector<1x256xf32>,
    %9 = arith.mulf %4, %4 : vector<1x256xf32>
    %c3 = arith.constant 3 : index
    %c0_5 = arith.constant 0 : index
    %10 = vector.load %arg7[%c3, %c0_5] : memref<8x256xf32, #tpu.memory_space<vmem>>, vector<1x256xf32>
    tpu.vector_store %arg7[%c3, %c0_5], %9 {strides = array<i32>} : memref<8x256xf32, #tpu.memory_space<vmem>>, vector<1x256xf32>,
    %cst_6 = arith.constant 0.000000e+00 : f32
    %11 = vector.broadcast %cst_6 : f32 to vector<4x256xf32>
    %c4 = arith.constant 4 : index
    %c0_7 = arith.constant 0 : index
    %12 = vector.load %arg7[%c4, %c0_7] : memref<8x256xf32, #tpu.memory_space<vmem>>, vector<4x256xf32>
    tpu.vector_store %arg7[%c4, %c0_7], %11 {strides = array<i32>} : memref<8x256xf32, #tpu.memory_space<vmem>>, vector<4x256xf32>,
    %c0_8 = arith.constant 0 : index
    %c0_9 = arith.constant 0 : index
    %13 = vector.load %arg2[%c0_8, %c0_9] : memref<32x8xf32, #tpu.memory_space<vmem>>, vector<32x8xf32>
    %c0_10 = arith.constant 0 : index
    %c0_11 = arith.constant 0 : index
    %14 = vector.load %arg7[%c0_10, %c0_11] : memref<8x256xf32, #tpu.memory_space<vmem>>, vector<8x256xf32>
    %cst_12 = arith.constant dense<0.000000e+00> : vector<32x256xf32>
    %15 = tpu.matmul %13, %14, %cst_12 {dimension_numbers = #tpu.dot_dimension_numbers<[1], [0], [0], [1], [0, 0, 1, 1], [], []>} : vector<32x8xf32>, vector<8x256xf32>, vector<32x256xf32> -> vector<32x256xf32>
    %c0_13 = arith.constant 0 : index
    %c0_14 = arith.constant 0 : index
    %16 = vector.load %arg3[%c0_13, %c0_14] : memref<32x1xf32, #tpu.memory_space<vmem>>, vector<32x1xf32>
    %17 = vector.broadcast %16 : vector<32x1xf32> to vector<32x256xf32>
    %18 = arith.addf %15, %17 : vector<32x256xf32>
    %cst_15 = arith.constant 0.000000e+00 : f32
    %19 = vector.broadcast %cst_15 : f32 to vector<32x256xf32>
    %20 = arith.maximumf %18, %19 : vector<32x256xf32>
    %c0_16 = arith.constant 0 : index
    %c0_17 = arith.constant 0 : index
    %21 = vector.load %arg4[%c0_16, %c0_17] : memref<32x1xf32, #tpu.memory_space<vmem>>, vector<32x1xf32>
    %22 = vector.broadcast %21 : vector<32x1xf32> to vector<32x256xf32>
    %23 = arith.mulf %20, %22 : vector<32x256xf32>
    %cst_18 = arith.constant dense<0.000000e+00> : vector<256xf32>
    %24 = vector.multi_reduction <add>, %23, %cst_18 [0] : vector<32x256xf32> to vector<256xf32>
    %25 = vector.shape_cast %24 : vector<256xf32> to vector<1x256xf32>
    %c0_19 = arith.constant 0 : index
    %c0_20 = arith.constant 0 : index
    %26 = memref.load %arg5[%c0_19, %c0_20] : memref<1x1xf32, #tpu.memory_space<smem>>
    %27 = vector.broadcast %26 : f32 to vector<1x256xf32>
    %28 = arith.addf %25, %27 : vector<1x256xf32>
    %29 = arith.negf %28 : vector<1x256xf32>
    %30 = math.exp %29 : vector<1x256xf32>
    %cst_21 = arith.constant 1.000000e+00 : f32
    %31 = vector.broadcast %cst_21 : f32 to vector<1x256xf32>
    %32 = arith.addf %31, %30 : vector<1x256xf32>
    %33 = arith.divf %31, %32 : vector<1x256xf32>
    %c0_22 = arith.constant 0 : index
    %c0_23 = arith.constant 0 : index
    %34 = vector.load %arg6[%c0_22, %c0_23] : memref<1x256xf32, #tpu.memory_space<vmem>>, vector<1x256xf32>
    tpu.vector_store %arg6[%c0_22, %c0_23], %33 {strides = array<i32>} : memref<1x256xf32, #tpu.memory_space<vmem>>, vector<1x256xf32>,
    return
  }
  func.func @transform_0(%arg0: i32) -> (i32, i32) {
    %c0_i32 = arith.constant 0 : i32
    %c0_i32_0 = arith.constant 0 : i32
    return %c0_i32, %arg0 : i32, i32
  }
  func.func @transform_1(%arg0: i32) -> (i32, i32) {
    %c0_i32 = arith.constant 0 : i32
    %c0_i32_0 = arith.constant 0 : i32
    %c0_i32_1 = arith.constant 0 : i32
    return %c0_i32, %c0_i32_0 : i32, i32
  }
  func.func @transform_2(%arg0: i32) -> (i32, i32) {
    %c0_i32 = arith.constant 0 : i32
    %c0_i32_0 = arith.constant 0 : i32
    %c0_i32_1 = arith.constant 0 : i32
    return %c0_i32, %c0_i32_0 : i32, i32
  }
  func.func @transform_3(%arg0: i32) -> (i32, i32) {
    %c0_i32 = arith.constant 0 : i32
    %c0_i32_0 = arith.constant 0 : i32
    %c0_i32_1 = arith.constant 0 : i32
    return %c0_i32, %c0_i32_0 : i32, i32
  }
  func.func @transform_4(%arg0: i32) -> (i32, i32) {
    %c0_i32 = arith.constant 0 : i32
    %c0_i32_0 = arith.constant 0 : i32
    %c0_i32_1 = arith.constant 0 : i32
    return %c0_i32, %c0_i32_0 : i32, i32
  }
  func.func @transform_5(%arg0: i32) -> (i32, i32) {
    %c0_i32 = arith.constant 0 : i32
    %c0_i32_0 = arith.constant 0 : i32
    return %c0_i32, %arg0 : i32, i32
  }
}

</mosaic_0001>

<llo_original>
// kernel: tpu_custom_call.1
$region0: #{tpu_custom_call.1}
  #allocation0 [shape = 'u32[]', space=smem, size = 0x4, offset = 0x4, fixed_abs, tag = 'smem constant byte address 0x4 - core index']
  #allocation1 [shape = 'u32[144,128]{1,0:T(1,128)}', space=vmem, size = 0x12000, scoped, tag = 'internal scratch']
  #allocation2 [shape = 'f32[8,256]{1,0:T(8,128)}', space=vmem, size = 0x2000, scoped, tag = 'scratch operand']
  #allocation3 [shape = 'f32[1,1]{1,0:T(1,128)S(6)}', space=smem, size = 0x200, scoped, tag = 'scoped memory for tpu_custom_call.1']
  %s0 = inlined_call_operand.vmem [shape: f32[1,512], index: 0, kind: input, shape index: {}]
  %s1 = inlined_call_operand.vmem [shape: f32[32,8], index: 1, kind: input, shape index: {}]
  %s2 = inlined_call_operand.vmem [shape: f32[32,1], index: 2, kind: input, shape index: {}]
  %s3 = inlined_call_operand.vmem [shape: f32[32,1], index: 3, kind: input, shape index: {}]
  %s4 = inlined_call_operand.<no memory space> [shape: f32[1,1], index: 4, kind: input, shape index: {}]
  %s5 = inlined_call_operand.hbm [shape: f32[1,512], index: 5, kind: output, shape index: {}]
  %s6 = sld [smem:[#allocation0]]
  $region53: #{tpu_custom_call.1} parent=0
    _
  %s8 = ssub.s32 1, %s6
  %s9 = scalar_select 0, %s8, %s6
  %10 = sst [smem:[#allocation3]] %s4
  $region1: #{tpu_custom_call.1} parent=0
    #allocation4 [shape = 'u8[2048]{0}', space=vmem, size = 0x800, scoped, tag = 'output window, operand 0']
    #allocation5 [shape = 's32[2]{0}', space=sflag, size = 0x8, scoped, tag = 'scoped memory for tpu_custom_call.1']
    %11 = vsyncpa [#allocation5], 0
    %s12 = scalar_lea.sflag [#allocation5], 1
    %13 = vsyncpa %s12, 0
    loop: start=0, step=1, limit=4
    $region2: #{tpu_custom_call.1} parent=1 // loop_pre_header
      _
    $region3: #{tpu_custom_call.1} parent=1 // loop_header
      %s15 = sphi 0, %s19
      %p16 = scmp.ge.s32.totalorder %s15, 4
      %s25 = sphi 0, %s27
      %s28 = sphi 0, %s25
      %s29 = sphi 0, %s28
      %s45 = sphi 0, %s29
      %s49 = sphi 0, %s49
      %s51 = sphi 0, %s49
      %s52 = sphi 0, %s51
      %s66 = sphi 0, %s52
      %s70 = sphi 0, %s70
      %s72 = sphi 0, %s70
      %s73 = sphi 0, %s72
      %s87 = sphi 0, %s73
      %s91 = sphi 0, %s91
      %s93 = sphi 0, %s91
      %s94 = sphi 0, %s93
      %s108 = sphi 0, %s94
      %s112 = sphi 0, %s112
      %s114 = sphi 0, %s112
      %s115 = sphi 0, %s114
      %s129 = sphi 0, %s115
      %s135 = sphi 0, %s137
      %s138 = sphi 0, %s135
      %s139 = sphi 0, %s138
      %s155 = sphi 0, %s139
    $region4: #{tpu_custom_call.1} parent=1 // loop_header_branch
      %18 = sbr.rel (%p16) target = $region8
    $region5: #{tpu_custom_call.1} parent=1 // loop_body
      %s20 = ssub.s32 %s15, 1
      %s21 = ssub.s32 %s15, 2
      %s22 = sadd.s32 %s15, 1
      %s23 = ssub.s32 %s15, %s22
      %p24 = scmp.eq.s32.totalorder %s23, 0
      %s26 = sadd.s32 %s25, 1
      %s27 = scalar_select %p24, %s25, %s26
      %p30 = pneg %p24
      %p31 = scmp.eq.s32.totalorder %s15, 1
      %p32 = por %p30, %p31
      %p33 = scmp.ne.s32.totalorder %s25, %s28
      %p34 = scmp.eq.s32.totalorder %s15, 0
      %p35 = por %p33, %p34
      %p36 = scmp.ne.s32.totalorder %s25, %s28
      %p37 = scmp.eq.s32.totalorder %s20, 1
      %p38 = por %p36, %p37
      %p39 = scmp.ne.s32.totalorder %s28, %s29
      %p40 = scmp.eq.s32.totalorder %s20, 0
      %p41 = por %p39, %p40
      %p42 = scmp.ne.s32.totalorder %s28, %s29
      %p43 = scmp.eq.s32.totalorder %s21, 1
      %p44 = por %p42, %p43
      %p46 = scmp.ne.s32.totalorder %s29, %s45
      %p47 = scmp.eq.s32.totalorder %s21, 0
      %p48 = por %p46, %p47
      %s50 = sadd.s32 %s49, 1
      %p53 = scmp.eq.s32.totalorder %s15, 1
      %p54 = scmp.ne.s32.totalorder %s49, %s51
      %p55 = scmp.eq.s32.totalorder %s15, 0
      %p56 = por %p54, %p55
      %p57 = scmp.ne.s32.totalorder %s49, %s51
      %p58 = scmp.eq.s32.totalorder %s20, 1
      %p59 = por %p57, %p58
      %p60 = scmp.ne.s32.totalorder %s51, %s52
      %p61 = scmp.eq.s32.totalorder %s20, 0
      %p62 = por %p60, %p61
      %p63 = scmp.ne.s32.totalorder %s51, %s52
      %p64 = scmp.eq.s32.totalorder %s21, 1
      %p65 = por %p63, %p64
      %p67 = scmp.ne.s32.totalorder %s52, %s66
      %p68 = scmp.eq.s32.totalorder %s21, 0
      %p69 = por %p67, %p68
      %s71 = sadd.s32 %s70, 1
      %p74 = scmp.eq.s32.totalorder %s15, 1
      %p75 = scmp.ne.s32.totalorder %s70, %s72
      %p76 = scmp.eq.s32.totalorder %s15, 0
      %p77 = por %p75, %p76
      %p78 = scmp.ne.s32.totalorder %s70, %s72
      %p79 = scmp.eq.s32.totalorder %s20, 1
      %p80 = por %p78, %p79
      %p81 = scmp.ne.s32.totalorder %s72, %s73
      %p82 = scmp.eq.s32.totalorder %s20, 0
      %p83 = por %p81, %p82
      %p84 = scmp.ne.s32.totalorder %s72, %s73
      %p85 = scmp.eq.s32.totalorder %s21, 1
      %p86 = por %p84, %p85
      %p88 = scmp.ne.s32.totalorder %s73, %s87
      %p89 = scmp.eq.s32.totalorder %s21, 0
      %p90 = por %p88, %p89
      %s92 = sadd.s32 %s91, 1
      %p95 = scmp.eq.s32.totalorder %s15, 1
      %p96 = scmp.ne.s32.totalorder %s91, %s93
      %p97 = scmp.eq.s32.totalorder %s15, 0
      %p98 = por %p96, %p97
      %p99 = scmp.ne.s32.totalorder %s91, %s93
      %p100 = scmp.eq.s32.totalorder %s20, 1
      %p101 = por %p99, %p100
      %p102 = scmp.ne.s32.totalorder %s93, %s94
      %p103 = scmp.eq.s32.totalorder %s20, 0
      %p104 = por %p102, %p103
      %p105 = scmp.ne.s32.totalorder %s93, %s94
      %p106 = scmp.eq.s32.totalorder %s21, 1
      %p107 = por %p105, %p106
      %p109 = scmp.ne.s32.totalorder %s94, %s108
      %p110 = scmp.eq.s32.totalorder %s21, 0
      %p111 = por %p109, %p110
      %s113 = sadd.s32 %s112, 1
      %p116 = scmp.eq.s32.totalorder %s15, 1
      %p117 = scmp.ne.s32.totalorder %s112, %s114
      %p118 = scmp.eq.s32.totalorder %s15, 0
      %p119 = por %p117, %p118
      %p120 = scmp.ne.s32.totalorder %s112, %s114
      %p121 = scmp.eq.s32.totalorder %s20, 1
      %p122 = por %p120, %p121
      %p123 = scmp.ne.s32.totalorder %s114, %s115
      %p124 = scmp.eq.s32.totalorder %s20, 0
      %p125 = por %p123, %p124
      %p126 = scmp.ne.s32.totalorder %s114, %s115
      %p127 = scmp.eq.s32.totalorder %s21, 1
      %p128 = por %p126, %p127
      %p130 = scmp.ne.s32.totalorder %s115, %s129
      %p131 = scmp.eq.s32.totalorder %s21, 0
      %p132 = por %p130, %p131
      %s133 = ssub.s32 %s15, %s22
      %p134 = scmp.eq.s32.totalorder %s133, 0
      %s136 = sadd.s32 %s135, 1
      %s137 = scalar_select %p134, %s135, %s136
      %p140 = pneg %p134
      %p141 = scmp.eq.s32.totalorder %s15, 1
      %p142 = por %p140, %p141
      %p143 = scmp.ne.s32.totalorder %s135, %s138
      %p144 = scmp.eq.s32.totalorder %s15, 0
      %p145 = por %p143, %p144
      %p146 = scmp.ne.s32.totalorder %s135, %s138
      %p147 = scmp.eq.s32.totalorder %s20, 1
      %p148 = por %p146, %p147
      %p149 = scmp.ne.s32.totalorder %s138, %s139
      %p150 = scmp.eq.s32.totalorder %s20, 0
      %p151 = por %p149, %p150
      %p152 = scmp.ne.s32.totalorder %s138, %s139
      %p153 = scmp.eq.s32.totalorder %s21, 1
      %p154 = por %p152, %p153
      %p156 = scmp.ne.s32.totalorder %s139, %s155
      %p157 = scmp.eq.s32.totalorder %s21, 0
      %p158 = por %p156, %p157
      %p159 = scmp.le.s32.totalorder 1, %s15
      %p160 = scmp.lt.s32.totalorder %s15, 3
      %p161 = pnand %p159, %p160
      %p162 = pneg %p161
      // Predicated region
      $region9: #{tpu_custom_call.1} parent=5 // pred_check
        _
      $region10: #{tpu_custom_call.1} parent=5 // pred_check_branch
        %164 = sbr.rel (%p161) target = $region12
      $region11: #{tpu_custom_call.1} parent=5 // pred_region
        %s165 = ssub.s32 %s15, 1
        // Predicated region
        $region13: #{tpu_custom_call.1} parent=11 // pred_check
          %p166 = pneg %p62
        $region14: #{tpu_custom_call.1} parent=11 // pred_check_branch
          %168 = sbr.rel (%p166) target = $region16
        $region15: #{tpu_custom_call.1} parent=11 // pred_region
          _
        $region16: #{tpu_custom_call.1} parent=11 // pred_fallthru
          _
        // Predicated region
        $region17: #{tpu_custom_call.1} parent=11 // pred_check
          %p169 = pneg %p83
        $region18: #{tpu_custom_call.1} parent=11 // pred_check_branch
          %171 = sbr.rel (%p169) target = $region20
        $region19: #{tpu_custom_call.1} parent=11 // pred_region
          _
        $region20: #{tpu_custom_call.1} parent=11 // pred_fallthru
          _
        // Predicated region
        $region21: #{tpu_custom_call.1} parent=11 // pred_check
          %p172 = pneg %p104
        $region22: #{tpu_custom_call.1} parent=11 // pred_check_branch
          %174 = sbr.rel (%p172) target = $region24
        $region23: #{tpu_custom_call.1} parent=11 // pred_region
          _
        $region24: #{tpu_custom_call.1} parent=11 // pred_fallthru
          _
        // Predicated region
        $region25: #{tpu_custom_call.1} parent=11 // pred_check
          %p175 = pneg %p125
        $region26: #{tpu_custom_call.1} parent=11 // pred_check_branch
          %177 = sbr.rel (%p175) target = $region28
        $region27: #{tpu_custom_call.1} parent=11 // pred_region
          _
        $region28: #{tpu_custom_call.1} parent=11 // pred_fallthru
          _
      $region12: #{tpu_custom_call.1} parent=5 // pred_fallthru
        _
      %p178 = scmp.lt.s32.totalorder %s15, 2
      // Predicated region
      $region29: #{tpu_custom_call.1} parent=5 // pred_check
        %p179 = pneg %p178
      $region30: #{tpu_custom_call.1} parent=5 // pred_check_branch
        %181 = sbr.rel (%p179) target = $region32
      $region31: #{tpu_custom_call.1} parent=5 // pred_region
        // Predicated region
        $region33: #{tpu_custom_call.1} parent=31 // pred_check
          %p182 = pneg %p35
        $region34: #{tpu_custom_call.1} parent=31 // pred_check_branch
          %184 = sbr.rel (%p182) target = $region36
        $region35: #{tpu_custom_call.1} parent=31 // pred_region
          %s185 = smul.u32 2, %s15
          %p186 = scmp.lt.s32.totalorder %s185, 3
          %s187 = scalar_select %p186, %s185, 3
          %s188 = scalar_lea.vmem %s0, %s187
          %s189 = smul.u32 2, %s15
        $region36: #{tpu_custom_call.1} parent=31 // pred_fallthru
          _
      $region32: #{tpu_custom_call.1} parent=5 // pred_fallthru
        _
      %p190 = scmp.le.s32.totalorder 1, %s15
      %p191 = scmp.lt.s32.totalorder %s15, 3
      %p192 = pnand %p190, %p191
      %p193 = pneg %p192
      // Predicated region
      $region37: #{tpu_custom_call.1} parent=5 // pred_check
        _
      $region38: #{tpu_custom_call.1} parent=5 // pred_check_branch
        %195 = sbr.rel (%p192) target = $region40
      $region39: #{tpu_custom_call.1} parent=5 // pred_region
        %s196 = ssub.s32 %s15, 1
        %s197 = smul.u32 2, %s20
        %p198 = scmp.lt.s32.totalorder %s197, 3
        %s199 = scalar_select %p198, %s197, 3
        %s200 = scalar_lea.vmem %s0, %s199
        %p201 = pneg %p41
        %p202 = pneg %p38
        %p203 = pneg %p62
        %p204 = pneg %p59
        %p205 = pneg %p83
        %p206 = pneg %p80
        %p207 = pneg %p104
        %p208 = pneg %p101
        %p209 = pneg %p125
        %p210 = pneg %p122
        %p211 = pneg %p151
        %p212 = pneg %p148
        %s213 = sand.u32 %s138, 1
        %s214 = scalar_lea.sflag [#allocation5], %s213
        %s215 = sand.u32 %s138, 1
        %s216 = smul.addr %s215, 2
        %s217 = scalar_lea.vmem [#allocation4], %s216
        %s218 = smul.u32 2, %s20
        %p219 = scmp.lt.s32.totalorder %s218, 3
        %s220 = scalar_select %p219, %s218, 3
        %s221 = scalar_lea.vmem %s0, %s220
        %s222 = smul.u32 2, %s20
        %s223 = smul.u32 2, %s20
        %v224 = vld [vmem:[%s221] sm:$0x3]
        %v225 = vmul.f32 %v224, 6.2831855
        %v226 = vand.u32 2147483647, %v225
        %vm227 = vcmp.le.f32.partialorder %v226, 0.7853982
        %vm228 = vcmp.lt.s32.totalorder %v225, 0
        %v229 = vand.u32 %v225, 2139095040
        %v230 = vshrl.u32 %v229, 23
        %v231 = vsub.s32 %v230, 127
        %v232 = vand.u32 2147483647, %v225
        %v233 = vand.u32 %v232, 8388607
        %v234 = vor.u32 %v233, 8388608
        %v235 = vsub.s32 0, %v234
        %v236 = vadd.s32 %v231, 1
        %vm237 = vcmp.gt.s32.totalorder %v236, 0
        %v238 = vsel %vm237, %v236, 0
        %v239 = vshrl.u32 %v238, 5
        %v240 = vand.u32 %v238, 31
        %v241 = vsub.s32 32, %v240
        %v242 = vshrl.u32 683565275, %v241
        %v243 = vshll.u32 683565275, %v240
        %v244 = vshrl.u32 2475754826, %v241
        %v245 = vor.u32 %v243, %v244
        %v246 = vshll.u32 2475754826, %v240
        %v247 = vshrl.u32 2131351028, %v241
        %v248 = vor.u32 %v246, %v247
        %v249 = vshll.u32 2131351028, %v240
        %v250 = vshrl.u32 2102212464, %v241
        %v251 = vor.u32 %v249, %v250
        %v252 = vshll.u32 2102212464, %v240
        %v253 = vshrl.u32 920167782, %v241
        %v254 = vor.u32 %v252, %v253
        %v255 = vshll.u32 920167782, %v240
        %v256 = vshrl.u32 1326507024, %v241
        %v257 = vor.u32 %v255, %v256
        %vm258 = vcmp.lt.s32.totalorder %v239, 1
        %vm259 = vcmp.lt.s32.totalorder %v239, 2
        %vm260 = vcmp.lt.s32.totalorder %v239, 3
        %vm261 = vcmp.lt.s32.totalorder %v239, 4
        %v262 = vsel %vm258, %v242, %v245
        %v263 = vsel %vm261, %v251, 2102212464
        %v264 = vsel %vm260, %v248, %v263
        %v265 = vsel %vm259, %v262, %v264
        %v266 = vsel %vm258, %v245, %v248
        %v267 = vsel %vm261, %v254, 920167782
        %v268 = vsel %vm260, %v251, %v267
        %v269 = vsel %vm259, %v266, %v268
        %v270 = vsel %vm258, %v248, %v251
        %v271 = vsel %vm261, %v257, 1326507024
        %v272 = vsel %vm260, %v254, %v271
        %v273 = vsel %vm259, %v270, %v272
        %v274 = vshll.u32 %v234, 8
        %v275 = vmul.u32.u64.compose %v274, %v273
        %v276 = vextract.low.u32 %v275
        %v277 = vextract.high.u32 %v275
        %v278 = vmul.u32.u64.compose %v274, %v269
        %v279 = vextract.low.u32 %v278
        %v280 = vextract.high.u32 %v278
        %v281 = vmul.u32 %v274, %v265
        %v282 = vadd.s32 %v277, %v279
        %vm283 = vc.u32 %v277, %v279
        %v284 = vadd.s32 %v280, 1
        %v285 = vsel %vm283, %v284, %v280
        %v286 = vadd.s32 %v281, %v285
        %v287 = vadd.s32 %v286, 536870912
        %v288 = vshrl.u32 %v287, 30
        %v289 = vshll.u32 %v288, 30
        %v290 = vsub.s32 %v286, %v289
        %vm291 = vcmp.lt.s32.totalorder %v290, 0
        %v292 = vsub.s32 0, %v290
        %v293 = vsel %vm291, %v292, %v290
        %v294 = vclz %v293
        %v295 = vsub.s32 %v294, 2
        %vm296 = vcmp.gt.s32.totalorder 0, %v295
        %v297 = vsel %vm296, 0, %v295
        %v298 = vsub.s32 32, %v297
        %v299 = vshll.u32 %v290, %v297
        %v300 = vshrl.u32 %v282, %v298
        %v301 = vor.u32 %v299, %v300
        %v302 = vsub.s32 4294967266, %v297
        %v303 = vadd.s32 %v302, 127
        %v304 = vshll.u32 %v303, 23
        %v305 = vor.u32 4788187, %v304
        %v306 = vand.u32 2147483647, %v305
        %v308 = vcvt.s32.f32 %v301
        %v309 = vmul.f32 %v308, %v306
        %v310 = vxor.u32 %v309, 2147483648
        %v311 = vsel %vm228, %v310, %v309
        %v312 = vsub.s32 4, %v288
        %v313 = vsel %vm228, %v312, %v288
        %v314 = vsel %vm227, %v225, %v311
        %v315 = vsel %vm227, 0, %v313
        %v316 = vcosq.f32.pop %v314
        %v317 = vsinq.f32.pop %v314
        %vm318 = vweird.f32 %v225
        %v319 = vadd.s32 %v315, 3
        %v320 = vand.u32 %v319, 3
        %vm321 = vcmp.lt.s32.totalorder %v320, 2
        %vm322 = vcmp.eq.s32.totalorder %v320, 0
        %v323 = vxor.u32 %v317, 2147483648
        %v324 = vsel %vm322, %v316, %v323
        %vm325 = vcmp.eq.s32.totalorder %v320, 2
        %v326 = vxor.u32 %v316, 2147483648
        %v327 = vsel %vm325, %v326, %v317
        %v328 = vsel %vm321, %v324, %v327
        %v329 = vsel %vm318, nan, %v328
        %v330 = vmul.f32 %v329, %v329
        %v331 = vlaneseq
        %vm332 = vcmp.ge.s32.totalorder %v331, 0
        %vm333 = vcmp.lt.s32.totalorder %v331, 256
        %vm334 = vmand %vm332, %vm333
        %335 = vst.msk [vmem:[#allocation2] ss:$8 sm:$0x3] %vm334, %v329
        %336 = vst.msk [vmem:[#allocation2] ss:$8 sm:$0x0] %vm334, %v329
        %s337 = scalar_lea.vmem [#allocation2], 1
        %338 = vst.msk [vmem:[%s337] ss:$8 sm:$0x3] %vm334, %v330
        %339 = vst.msk [vmem:[%s337] ss:$8 sm:$0x0] %vm334, %v330
        %v340 = vmul.f32 %v330, %v329
        %s341 = scalar_lea.vmem [#allocation2], 2
        %342 = vst.msk [vmem:[%s341] ss:$8 sm:$0x3] %vm334, %v340
        %343 = vst.msk [vmem:[%s341] ss:$8 sm:$0x0] %vm334, %v340
        %v344 = vmul.f32 %v330, %v330
        %s345 = scalar_lea.vmem [#allocation2], 3
        %346 = vst.msk [vmem:[%s345] ss:$8 sm:$0x3] %vm334, %v344
        %347 = vst.msk [vmem:[%s345] ss:$8 sm:$0x0] %vm334, %v344
        %348 = vst [vmem:[#allocation2] sm:$0xf0] 0.0
        %349 = vst [vmem:[#allocation2 + $0x8] sm:$0xf0] 0.0
        %v350 = vld [vmem:[%s1] sm:$0xff]
        %v351 = vld [vmem:[%s1 + $0x8] sm:$0xff]
        %v352 = vld [vmem:[%s1 + $0x10] sm:$0xff]
        %v353 = vld [vmem:[%s1 + $0x18] sm:$0xff]
        %v354 = vld [vmem:[#allocation2] sm:$0xff]
        %v355 = vld [vmem:[#allocation2 + $0x8] sm:$0xff]
        %v356 = vld [vmem:[%s2] sm:$0xff]
        %v357 = vld [vmem:[%s2 + $0x8] sm:$0xff]
        %v358 = vld [vmem:[%s2 + $0x10] sm:$0xff]
        %v359 = vld [vmem:[%s2 + $0x18] sm:$0xff]
        %361 = vset.pattern.permute.xlu0 0
        %362 = vperm.xlu0 %361, %v356
        %v363 = vpop.permute.xlu0 %362
        %366 = vset.pattern.permute.xlu0 0
        %367 = vperm.xlu0 %366, %v357
        %v368 = vpop.permute.xlu0 %367
        %371 = vset.pattern.permute.xlu0 0
        %372 = vperm.xlu0 %371, %v358
        %v373 = vpop.permute.xlu0 %372
        %376 = vset.pattern.permute.xlu0 0
        %377 = vperm.xlu0 %376, %v359
        %v378 = vpop.permute.xlu0 %377
        %vm380 = vcmask 64512
        %v382 = vsel %vm380, %v350, 0
        %v385 = vsel %vm380, %v351, 0
        %v388 = vsel %vm380, %v352, 0
        %v391 = vsel %vm380, %v353, 0
        %393 = vmatprep.subr.mxu0 0.0
        %394 = vmatpush1.msra.mxu0 0.0
        %395 = vmatprep.subr.mxu0 0.0
        %396 = vmatpush1.msra.mxu0 0.0
        %397 = vmatprep.subr.mxu0 0.0
        %398 = vmatpush1.msra.mxu0 0.0
        %399 = vmatprep.subr.mxu0 0.0
        %400 = vmatpush1.msra.mxu0 0.0
        %401 = vmatprep.subr.mxu0 0.0
        %402 = vmatpush1.msra.mxu0 0.0
        %403 = vmatprep.subr.mxu0 0.0
        %404 = vmatpush1.msra.mxu0 0.0
        %405 = vmatprep.subr.mxu0 0.0
        %406 = vmatpush1.msra.mxu0 0.0
        %407 = vmatprep.subr.mxu0 0.0
        %408 = vmatpush1.msra.mxu0 0.0
        %409 = vmatprep.subr.mxu0 0.0
        %410 = vmatpush1.msra.mxu0 0.0
        %411 = vmatprep.subr.mxu0 0.0
        %412 = vmatpush1.msra.mxu0 0.0
        %413 = vmatprep.subr.mxu0 0.0
        %414 = vmatpush1.msra.mxu0 0.0
        %415 = vmatprep.subr.mxu0 0.0
        %416 = vmatpush1.msra.mxu0 0.0
        %417 = vmatprep.subr.mxu0 0.0
        %418 = vmatpush1.msra.mxu0 0.0
        %419 = vmatprep.subr.mxu0 0.0
        %420 = vmatpush1.msra.mxu0 0.0
        %421 = vmatprep.subr.mxu0 0.0
        %422 = vmatpush1.msra.mxu0 0.0
        %423 = vmatprep.subr.mxu0 %v355
        %424 = vmatpush1.msra.mxu0 %v354
        %425 = vmatprep.subr.mxu0 0.0
        %426 = vmatpush2.msra.mxu0 0.0
        %427 = vmatprep.subr.mxu0 0.0
        %428 = vmatpush2.msra.mxu0 0.0
        %429 = vmatprep.subr.mxu0 0.0
        %430 = vmatpush2.msra.mxu0 0.0
        %431 = vmatprep.subr.mxu0 0.0
        %432 = vmatpush2.msra.mxu0 0.0
        %433 = vmatprep.subr.mxu0 0.0
        %434 = vmatpush2.msra.mxu0 0.0
        %435 = vmatprep.subr.mxu0 0.0
        %436 = vmatpush2.msra.mxu0 0.0
        %437 = vmatprep.subr.mxu0 0.0
        %438 = vmatpush2.msra.mxu0 0.0
        %439 = vmatprep.subr.mxu0 0.0
        %440 = vmatpush2.msra.mxu0 0.0
        %441 = vmatprep.subr.mxu0 0.0
        %442 = vmatpush2.msra.mxu0 0.0
        %443 = vmatprep.subr.mxu0 0.0
        %444 = vmatpush2.msra.mxu0 0.0
        %445 = vmatprep.subr.mxu0 0.0
        %446 = vmatpush2.msra.mxu0 0.0
        %447 = vmatprep.subr.mxu0 0.0
        %448 = vmatpush2.msra.mxu0 0.0
        %449 = vmatprep.subr.mxu0 0.0
        %450 = vmatpush2.msra.mxu0 0.0
        %451 = vmatprep.subr.mxu0 0.0
        %452 = vmatpush2.msra.mxu0 0.0
        %453 = vmatprep.subr.mxu0 0.0
        %454 = vmatpush2.msra.mxu0 0.0
        %455 = vmatprep.subr.mxu0 0.0
        %456 = vmatpush2.msra.mxu0 0.0
        %457 = vmatprep.mubr.f32.mxu0 0.0
        %458 = vmatmul.mubr.f32.gmra.mxu0 %v382
        %v459 = vpop.f32.mrf.mxu0
        %v460 = vadd.f32 %v363, %v459
        %v461 = vpop.f32.mrf.mxu0
        %v462 = vadd.f32 %v363, %v461
        %463 = vmatprep.mubr.f32.mxu0 0.0
        %464 = vmatmul.mubr.f32.gmra.mxu0 %v385
        %v465 = vpop.f32.mrf.mxu0
        %v466 = vadd.f32 %v368, %v465
        %v467 = vpop.f32.mrf.mxu0
        %v468 = vadd.f32 %v368, %v467
        %469 = vmatprep.mubr.f32.mxu0 0.0
        %470 = vmatmul.mubr.f32.gmra.mxu0 %v388
        %v471 = vpop.f32.mrf.mxu0
        %v472 = vadd.f32 %v373, %v471
        %v473 = vpop.f32.mrf.mxu0
        %v474 = vadd.f32 %v373, %v473
        %475 = vmatprep.mubr.f32.mxu0 0.0
        %476 = vmatmul.mubr.f32.gmra.mxu0 %v391
        %v477 = vpop.f32.mrf.mxu0
        %v478 = vadd.f32 %v378, %v477
        %v479 = vpop.f32.mrf.mxu0
        %v480 = vadd.f32 %v378, %v479
        %481 = vdwg.mxu0
        %v482 = vmax.f32 %v460, 0.0
        %v483 = vmax.f32 %v462, 0.0
        %v484 = vmax.f32 %v466, 0.0
        %v485 = vmax.f32 %v468, 0.0
        %v486 = vmax.f32 %v472, 0.0
        %v487 = vmax.f32 %v474, 0.0
        %v488 = vmax.f32 %v478, 0.0
        %v489 = vmax.f32 %v480, 0.0
        %v490 = vld [vmem:[%s3] sm:$0xff]
        %v491 = vld [vmem:[%s3 + $0x8] sm:$0xff]
        %v492 = vld [vmem:[%s3 + $0x10] sm:$0xff]
        %v493 = vld [vmem:[%s3 + $0x18] sm:$0xff]
        %495 = vset.pattern.permute.xlu0 0
        %496 = vperm.xlu0 %495, %v490
        %v497 = vpop.permute.xlu0 %496
        %500 = vset.pattern.permute.xlu0 0
        %501 = vperm.xlu0 %500, %v491
        %v502 = vpop.permute.xlu0 %501
        %505 = vset.pattern.permute.xlu0 0
        %506 = vperm.xlu0 %505, %v492
        %v507 = vpop.permute.xlu0 %506
        %510 = vset.pattern.permute.xlu0 0
        %511 = vperm.xlu0 %510, %v493
        %v512 = vpop.permute.xlu0 %511
        %v514 = vmul.f32 %v482, %v497
        %v515 = vmul.f32 %v483, %v497
        %v516 = vmul.f32 %v484, %v502
        %v517 = vmul.f32 %v485, %v502
        %v518 = vmul.f32 %v486, %v507
        %v519 = vmul.f32 %v487, %v507
        %v520 = vmul.f32 %v488, %v512
        %v521 = vmul.f32 %v489, %v512
        %v522 = vadd.f32 %v514, %v516
        %v523 = vadd.f32 %v522, %v518
        %v524 = vadd.f32 %v523, %v520
        %v525 = vrot.slane %v524, 4
        %v526 = vadd.f32 %v524, %v525
        %v527 = vrot.slane %v526, 2
        %v528 = vadd.f32 %v526, %v527
        %v529 = vrot.slane %v528, 1
        %v530 = vadd.f32 %v528, %v529
        %v531 = vadd.f32 %v515, %v517
        %v532 = vadd.f32 %v531, %v519
        %v533 = vadd.f32 %v532, %v521
        %v534 = vrot.slane %v533, 4
        %v535 = vadd.f32 %v533, %v534
        %v536 = vrot.slane %v535, 2
        %v537 = vadd.f32 %v535, %v536
        %v538 = vrot.slane %v537, 1
        %v539 = vadd.f32 %v537, %v538
        %s540 = sld [smem:[#allocation3]]
        %v541 = vstv %s540
        %v542 = vadd.f32 %v530, %v541
        %v543 = vadd.f32 %v539, %v541
        %v544 = vxor.u32 %v542, 2147483648
        %v545 = vxor.u32 %v543, 2147483648
        %v546 = vmul.f32 %v544, 1.442695
        %v547 = vpow.pop %v546
        %v548 = vmul.f32 %v545, 1.442695
        %v549 = vpow.pop %v548
        %v550 = vadd.f32 %v547, 1.0
        %v551 = vadd.f32 %v549, 1.0
        %v552 = vrcp.pop %v550
        %v553 = vmul.f32 1.0, %v552
        %v554 = vrcp.pop %v551
        %v555 = vmul.f32 1.0, %v554
        %v558 = vcombine.low %v553, %v555
        %v560 = vunpack.c.l.s4 1966171168
        %v561 = vunpack.c.0.s8 %v560
        %v562 = vlaneseq
        %v563 = vshrl.u32 %v562, 7
        %v564 = vsub.s32 %v561, %v563
        %v565 = vrot.slane %v558, %v564
        %v567 = vunpack.c.l.s4 1966171168
        %v568 = vunpack.c.0.s8 %v567
        %v569 = vlaneseq
        %v570 = vshrl.u32 %v569, 7
        %v571 = vsub.s32 %v568, %v570
        %v572 = vrot.slane %v565, %v571
        %574 = vst.msk [vmem:[%s217] sm:$0x3] %vm334, %v572
        %s575 = sand.u32 %s138, 1
        %s576 = scalar_lea.sflag [#allocation5], %s575
        %s577 = sand.u32 %s138, 1
        %s578 = smul.addr %s577, 2
        %s579 = scalar_lea.vmem [#allocation4], %s578
        // Predicated region
        $region41: #{tpu_custom_call.1} parent=39 // pred_check
          %p580 = pneg %p148
        $region42: #{tpu_custom_call.1} parent=39 // pred_check_branch
          %582 = sbr.rel (%p580) target = $region44
        $region43: #{tpu_custom_call.1} parent=39 // pred_region
          %s583 = smul.u32 2, %s20
          %s585 = ssub.s32 32, 32
          %586 = vsyncadd %s576, %s585
          %s587 = smul.addr %s583, 16
          %s588 = scalar_lea.hbm %s5, %s587
          %s590 = sshll.u32 %s579, 4
          %s591 = int_to_ptr.vmem [resolvable:$true] %s590
          %593 = dma.vmem_to_hbm [thread:$0]  %s591, 32, %s588, %s576
        $region44: #{tpu_custom_call.1} parent=39 // pred_fallthru
          _
      $region40: #{tpu_custom_call.1} parent=5 // pred_fallthru
        _
      %p594 = scmp.le.s32.totalorder 2, %s15
      // Predicated region
      $region45: #{tpu_custom_call.1} parent=5 // pred_check
        %p595 = pneg %p594
      $region46: #{tpu_custom_call.1} parent=5 // pred_check_branch
        %597 = sbr.rel (%p595) target = $region48
      $region47: #{tpu_custom_call.1} parent=5 // pred_region
        %s598 = ssub.s32 %s15, 2
        // Predicated region
        $region49: #{tpu_custom_call.1} parent=47 // pred_check
          %p599 = pneg %p154
        $region50: #{tpu_custom_call.1} parent=47 // pred_check_branch
          %601 = sbr.rel (%p599) target = $region52
        $region51: #{tpu_custom_call.1} parent=47 // pred_region
          %s602 = sand.u32 %s139, 1
          %s603 = scalar_lea.sflag [#allocation5], %s602
          %s604 = sand.u32 %s139, 1
          %s605 = smul.addr %s604, 2
          %s606 = scalar_lea.vmem [#allocation4], %s605
          %607 = dma.done %s603, 32
        $region52: #{tpu_custom_call.1} parent=47 // pred_fallthru
          _
      $region48: #{tpu_custom_call.1} parent=5 // pred_fallthru
        _
    $region6: #{tpu_custom_call.1} parent=1 // loop_footer
      %s19 = sadd.s32 1, %s15
    $region7: #{tpu_custom_call.1} parent=1 // loop_footer_branch
      %14 = sbr.rel target = $region3
    $region8: #{tpu_custom_call.1} parent=1 // loop_exit
      _
    %608 = vsyncpa [#allocation5], 1
    %s609 = scalar_lea.sflag [#allocation5], 1
    %610 = vsyncpa %s609, 1

</llo_original>
